<compile_context>
chip_gen: v7x
topology: tpu7x:2x2x1
jax: 0.10.0
libtpu: 0.0.40
codegen_flags: <defaults>
</compile_context>

<pallas_src>
import math

import jax
import jax.numpy as jnp
from jax import lax
from jax.experimental import pallas as pl
from jax.experimental.pallas import tpu as pltpu


_OUT_FEATURES = 100
_OUT_PAD = 128  # lane-dense padded output width


def _silu(x):
    # SiLU(x) = x * sigmoid(x), sigmoid via tanh (EUP), numerically safe.
    return x * (0.5 * jnp.tanh(0.5 * x) + 0.5)


def simple_hdr_kernel(x_ref, w1_ref, b1_ref, w2_ref, b2_ref,
                      w3_ref, b3_ref, w5t_ref, b5_ref, o_ref):
    x = x_ref[...]                                      # (1, tile)

    # Layer 1: in_features == 1 -> pure broadcast multiply, off the MXU.
    h = w1_ref[...] * x + b1_ref[...]                   # (10, tile)
    h = _silu(h)

    # Layers 2/3: (10,10) @ (10,tile) on the MXU (tiny; MXU has huge slack).
    h = _silu(jnp.dot(w2_ref[...], h, preferred_element_type=jnp.float32)
              + b2_ref[...])
    h = _silu(jnp.dot(w3_ref[...], h, preferred_element_type=jnp.float32)
              + b3_ref[...])

    # Layer 5: contract h's sublane axis with w5t (10, 128) so the result is
    # already batch-major (tile, 128): lane-dense, contiguous output block,
    # no transpose outside the kernel.
    out = lax.dot_general(h, w5t_ref[...], (((0,), (0,)), ((), ())),
                          preferred_element_type=jnp.float32)
    out = out + b5_ref[...]                              # b5: (1, 128)
    # Note: folding biases into the MXU (ones-row trick) only pays off once
    # the kernel is VALU-bound (v7x after the DMA fixes); skipped for clarity.
    o_ref[...] = out.astype(o_ref.dtype)


def simple_hdr_forward(x, params, *, tm=8192):
    """x: (N, 1) float32 (or (N,)). params: dict of weights. Returns (N, 100)."""
    N = x.shape[0]

    # Lane tile: multiple of 128, capped at 16384 for v7x's VMEM budget, and
    # no larger than ~half the (rounded) batch so the grid has >= 2 steps
    # whenever possible (v7x megacore via dimension_semantics=("parallel",)).
    cap = max(128, (min(int(tm), 16384) // 128) * 128)
    tile = max(128, min(cap, pl.cdiv(N, 2 * 128) * 128))
    n_pad = pl.cdiv(N, tile) * tile

    # Batch onto the lane axis; pad to a tile multiple (padded columns are
    # computed but sliced off below).
    xT = x.reshape(1, N)
    if n_pad != N:
        xT = jnp.pad(xT, ((0, 0), (0, n_pad - N)))

    w1, b1 = params["w1"], params["b1"]
    w2, b2 = params["w2"], params["b2"]
    w3, b3 = params["w3"], params["b3"]
    # Layer-5 weights: zero-pad 100 -> 128 output features and pre-transpose
    # to (10, 128) so the kernel's TN dot lands directly in batch-major layout.
    w5t = jnp.pad(params["w5"], ((0, _OUT_PAD - _OUT_FEATURES), (0, 0))).T
    b5r = jnp.pad(params["b5"], ((0, _OUT_PAD - _OUT_FEATURES), (0, 0))).T

    def full_block(a):
        # Whole-array block, constant index map: VMEM-resident across the
        # whole grid, no per-step re-DMA (weights total < 6 KB).
        return pl.BlockSpec(a.shape, lambda i: (0, 0))

    # Explicit VMEM budget: double-buffered (tile, 128) f32 output blocks plus
    # in-kernel f32 temporaries.  Needed for big tiles on v5e (16 MiB default
    # scoped VMEM) while staying well under v7x's 64 MiB physical VMEM.
    vmem_limit = int(min(48 * 1024 * 1024,
                         5 * tile * _OUT_PAD * 4 + 3 * 1024 * 1024))

    out = pl.pallas_call(
        simple_hdr_kernel,
        out_shape=jax.ShapeDtypeStruct((n_pad, _OUT_PAD), jnp.float32),
        grid_spec=pltpu.PrefetchScalarGridSpec(
            num_scalar_prefetch=0,
            grid=(n_pad // tile,),
            in_specs=[
                pl.BlockSpec((1, tile), lambda i: (0, i)),   # x tile (lanes)
                full_block(w1), full_block(b1),
                full_block(w2), full_block(b2),
                full_block(w3), full_block(b3),
                full_block(w5t), full_block(b5r),
            ],
            out_specs=pl.BlockSpec((tile, _OUT_PAD), lambda i: (i, 0)),
        ),
        compiler_params=pltpu.CompilerParams(
            dimension_semantics=("parallel",),
            vmem_limit_bytes=vmem_limit),
    )(xT, w1, b1, w2, b2, w3, b3, w5t, b5r)

    # Drop the batch padding and the 28 padded output features.  This is a
    # row-contiguous slice -- far cheaper than the old (100, N).T transpose.
    return out[:N, :_OUT_FEATURES]


def init_params(key):
    """Xavier-uniform with tanh gain (5/3), biases zero — matches init_xavier().

    Weights are stored in PyTorch layout (out_features, in_features); biases as
    (out_features, 1) columns.
    """
    gain = 5.0 / 3.0  # nn.init.calculate_gain('tanh')
    dims = [("w1", 1, 10), ("w2", 10, 10), ("w3", 10, 10), ("w5", 10, 100)]
    params = {}
    keys = jax.random.split(key, len(dims))
    for k, (name, fan_in, fan_out) in zip(keys, dims):
        bound = gain * math.sqrt(6.0 / (fan_in + fan_out))
        params[name] = jax.random.uniform(
            k, (fan_out, fan_in), jnp.float32, minval=-bound, maxval=bound)
        params["b" + name[1:]] = jnp.zeros((fan_out, 1), jnp.float32)
    return params


def reference_forward(x, params):
    """Plain-JAX reference in the usual (N, features) layout."""
    def silu(h):
        return h * jax.nn.sigmoid(h)
    h = silu(x @ params["w1"].T + params["b1"].T)
    h = silu(h @ params["w2"].T + params["b2"].T)
    h = silu(h @ params["w3"].T + params["b3"].T)
    return h @ params["w5"].T + params["b5"].T


if __name__ == "__main__":
    key = jax.random.PRNGKey(0)
    pkey, xkey = jax.random.split(key)
    params = init_params(pkey)

    # Batch of scalar samples (view(-1, 1) in the PyTorch code).  N is chosen
    # so the padding path is exercised and the tile logic still yields a
    # grid of length 2 (tile=256, n_pad=512).
    N = 300
    x = jax.random.normal(xkey, (N, 1), jnp.float32)

    out = simple_hdr_forward(x, params)
    out = jax.block_until_ready(out)

    ref = reference_forward(x, params)
    assert out.shape == (N, 100)
    assert jnp.allclose(out, ref, atol=2e-4, rtol=2e-4), "mismatch vs JAX reference"

    print("KERNEL_OK")
</pallas_src>

<mosaic_0001>
module attributes {stable_mosaic.version = 11 : i64} {
  func.func @simple_hdr_kernel(%arg0: i32, %arg1: memref<1x256xf32, #tpu.memory_space<vmem>>, %arg2: memref<10x1xf32, #tpu.memory_space<vmem>>, %arg3: memref<10x1xf32, #tpu.memory_space<vmem>>, %arg4: memref<10x10xf32, #tpu.memory_space<vmem>>, %arg5: memref<10x1xf32, #tpu.memory_space<vmem>>, %arg6: memref<10x10xf32, #tpu.memory_space<vmem>>, %arg7: memref<10x1xf32, #tpu.memory_space<vmem>>, %arg8: memref<10x128xf32, #tpu.memory_space<vmem>>, %arg9: memref<1x128xf32, #tpu.memory_space<vmem>>, %arg10: memref<256x128xf32, #tpu.memory_space<vmem>>) attributes {dimension_semantics = [#tpu.dimension_semantics<parallel>], iteration_bounds = array<i64: 2>, scalar_prefetch = 0 : i64, scratch_operands = 0 : i64, tpu.core_type = #tpu.core_type<tc>, window_params = [{transform_indices = @transform_0, window_bounds = array<i64: 1, 256>}, {pipeline_mode = #tpu.pipeline_mode<synchronous>, transform_indices = @transform_1, window_bounds = array<i64: 10, 1>}, {pipeline_mode = #tpu.pipeline_mode<synchronous>, transform_indices = @transform_2, window_bounds = array<i64: 10, 1>}, {pipeline_mode = #tpu.pipeline_mode<synchronous>, transform_indices = @transform_3, window_bounds = array<i64: 10, 10>}, {pipeline_mode = #tpu.pipeline_mode<synchronous>, transform_indices = @transform_4, window_bounds = array<i64: 10, 1>}, {pipeline_mode = #tpu.pipeline_mode<synchronous>, transform_indices = @transform_5, window_bounds = array<i64: 10, 10>}, {pipeline_mode = #tpu.pipeline_mode<synchronous>, transform_indices = @transform_6, window_bounds = array<i64: 10, 1>}, {pipeline_mode = #tpu.pipeline_mode<synchronous>, transform_indices = @transform_7, window_bounds = array<i64: 10, 128>}, {pipeline_mode = #tpu.pipeline_mode<synchronous>, transform_indices = @transform_8, window_bounds = array<i64: 1, 128>}, {transform_indices = @transform_9, window_bounds = array<i64: 256, 128>}]} {
    %c0 = arith.constant 0 : index
    %c0_0 = arith.constant 0 : index
    %0 = vector.load %arg1[%c0, %c0_0] : memref<1x256xf32, #tpu.memory_space<vmem>>, vector<1x256xf32>
    %c0_1 = arith.constant 0 : index
    %c0_2 = arith.constant 0 : index
    %1 = vector.load %arg2[%c0_1, %c0_2] : memref<10x1xf32, #tpu.memory_space<vmem>>, vector<10x1xf32>
    %2 = vector.broadcast %1 : vector<10x1xf32> to vector<10x256xf32>
    %3 = vector.broadcast %0 : vector<1x256xf32> to vector<10x256xf32>
    %4 = arith.mulf %2, %3 : vector<10x256xf32>
    %c0_3 = arith.constant 0 : index
    %c0_4 = arith.constant 0 : index
    %5 = vector.load %arg3[%c0_3, %c0_4] : memref<10x1xf32, #tpu.memory_space<vmem>>, vector<10x1xf32>
    %6 = vector.broadcast %5 : vector<10x1xf32> to vector<10x256xf32>
    %7 = arith.addf %4, %6 : vector<10x256xf32>
    %cst = arith.constant 5.000000e-01 : f32
    %8 = vector.broadcast %cst : f32 to vector<10x256xf32>
    %9 = arith.mulf %8, %7 : vector<10x256xf32>
    %10 = math.tanh %9 : vector<10x256xf32>
    %cst_5 = arith.constant 5.000000e-01 : f32
    %11 = vector.broadcast %cst_5 : f32 to vector<10x256xf32>
    %12 = arith.mulf %11, %10 : vector<10x256xf32>
    %cst_6 = arith.constant 5.000000e-01 : f32
    %13 = vector.broadcast %cst_6 : f32 to vector<10x256xf32>
    %14 = arith.addf %12, %13 : vector<10x256xf32>
    %15 = arith.mulf %7, %14 : vector<10x256xf32>
    %c0_7 = arith.constant 0 : index
    %c0_8 = arith.constant 0 : index
    %16 = vector.load %arg4[%c0_7, %c0_8] : memref<10x10xf32, #tpu.memory_space<vmem>>, vector<10x10xf32>
    %cst_9 = arith.constant dense<0.000000e+00> : vector<10x256xf32>
    %17 = tpu.matmul %16, %15, %cst_9 {dimension_numbers = #tpu.dot_dimension_numbers<[1], [0], [0], [1], [0, 0, 1, 1], [], []>} : vector<10x10xf32>, vector<10x256xf32>, vector<10x256xf32> -> vector<10x256xf32>
    %c0_10 = arith.constant 0 : index
    %c0_11 = arith.constant 0 : index
    %18 = vector.load %arg5[%c0_10, %c0_11] : memref<10x1xf32, #tpu.memory_space<vmem>>, vector<10x1xf32>
    %19 = vector.broadcast %18 : vector<10x1xf32> to vector<10x256xf32>
    %20 = arith.addf %17, %19 : vector<10x256xf32>
    %cst_12 = arith.constant 5.000000e-01 : f32
    %21 = vector.broadcast %cst_12 : f32 to vector<10x256xf32>
    %22 = arith.mulf %21, %20 : vector<10x256xf32>
    %23 = math.tanh %22 : vector<10x256xf32>
    %cst_13 = arith.constant 5.000000e-01 : f32
    %24 = vector.broadcast %cst_13 : f32 to vector<10x256xf32>
    %25 = arith.mulf %24, %23 : vector<10x256xf32>
    %cst_14 = arith.constant 5.000000e-01 : f32
    %26 = vector.broadcast %cst_14 : f32 to vector<10x256xf32>
    %27 = arith.addf %25, %26 : vector<10x256xf32>
    %28 = arith.mulf %20, %27 : vector<10x256xf32>
    %c0_15 = arith.constant 0 : index
    %c0_16 = arith.constant 0 : index
    %29 = vector.load %arg6[%c0_15, %c0_16] : memref<10x10xf32, #tpu.memory_space<vmem>>, vector<10x10xf32>
    %cst_17 = arith.constant dense<0.000000e+00> : vector<10x256xf32>
    %30 = tpu.matmul %29, %28, %cst_17 {dimension_numbers = #tpu.dot_dimension_numbers<[1], [0], [0], [1], [0, 0, 1, 1], [], []>} : vector<10x10xf32>, vector<10x256xf32>, vector<10x256xf32> -> vector<10x256xf32>
    %c0_18 = arith.constant 0 : index
    %c0_19 = arith.constant 0 : index
    %31 = vector.load %arg7[%c0_18, %c0_19] : memref<10x1xf32, #tpu.memory_space<vmem>>, vector<10x1xf32>
    %32 = vector.broadcast %31 : vector<10x1xf32> to vector<10x256xf32>
    %33 = arith.addf %30, %32 : vector<10x256xf32>
    %cst_20 = arith.constant 5.000000e-01 : f32
    %34 = vector.broadcast %cst_20 : f32 to vector<10x256xf32>
    %35 = arith.mulf %34, %33 : vector<10x256xf32>
    %36 = math.tanh %35 : vector<10x256xf32>
    %cst_21 = arith.constant 5.000000e-01 : f32
    %37 = vector.broadcast %cst_21 : f32 to vector<10x256xf32>
    %38 = arith.mulf %37, %36 : vector<10x256xf32>
    %cst_22 = arith.constant 5.000000e-01 : f32
    %39 = vector.broadcast %cst_22 : f32 to vector<10x256xf32>
    %40 = arith.addf %38, %39 : vector<10x256xf32>
    %41 = arith.mulf %33, %40 : vector<10x256xf32>
    %c0_23 = arith.constant 0 : index
    %c0_24 = arith.constant 0 : index
    %42 = vector.load %arg8[%c0_23, %c0_24] : memref<10x128xf32, #tpu.memory_space<vmem>>, vector<10x128xf32>
    %cst_25 = arith.constant dense<0.000000e+00> : vector<256x128xf32>
    %43 = tpu.matmul %41, %42, %cst_25 {dimension_numbers = #tpu.dot_dimension_numbers<[0], [0], [1], [1], [0, 1, 1, 1], [], []>} : vector<10x256xf32>, vector<10x128xf32>, vector<256x128xf32> -> vector<256x128xf32>
    %c0_26 = arith.constant 0 : index
    %c0_27 = arith.constant 0 : index
    %44 = vector.load %arg9[%c0_26, %c0_27] : memref<1x128xf32, #tpu.memory_space<vmem>>, vector<1x128xf32>
    %45 = vector.broadcast %44 : vector<1x128xf32> to vector<256x128xf32>
    %46 = arith.addf %43, %45 : vector<256x128xf32>
    %c0_28 = arith.constant 0 : index
    %c0_29 = arith.constant 0 : index
    %47 = vector.load %arg10[%c0_28, %c0_29] : memref<256x128xf32, #tpu.memory_space<vmem>>, vector<256x128xf32>
    tpu.vector_store %arg10[%c0_28, %c0_29], %46 {strides = array<i32>} : memref<256x128xf32, #tpu.memory_space<vmem>>, vector<256x128xf32>,
    return
  }
  func.func @transform_0(%arg0: i32) -> (i32, i32) {
    %c0_i32 = arith.constant 0 : i32
    %c0_i32_0 = arith.constant 0 : i32
    return %c0_i32, %arg0 : i32, i32
  }
  func.func @transform_1(%arg0: i32) -> (i32, i32) {
    %c0_i32 = arith.constant 0 : i32
    %c0_i32_0 = arith.constant 0 : i32
    %c0_i32_1 = arith.constant 0 : i32
    return %c0_i32, %c0_i32_0 : i32, i32
  }
  func.func @transform_2(%arg0: i32) -> (i32, i32) {
    %c0_i32 = arith.constant 0 : i32
    %c0_i32_0 = arith.constant 0 : i32
    %c0_i32_1 = arith.constant 0 : i32
    return %c0_i32, %c0_i32_0 : i32, i32
  }
  func.func @transform_3(%arg0: i32) -> (i32, i32) {
    %c0_i32 = arith.constant 0 : i32
    %c0_i32_0 = arith.constant 0 : i32
    %c0_i32_1 = arith.constant 0 : i32
    return %c0_i32, %c0_i32_0 : i32, i32
  }
  func.func @transform_4(%arg0: i32) -> (i32, i32) {
    %c0_i32 = arith.constant 0 : i32
    %c0_i32_0 = arith.constant 0 : i32
    %c0_i32_1 = arith.constant 0 : i32
    return %c0_i32, %c0_i32_0 : i32, i32
  }
  func.func @transform_5(%arg0: i32) -> (i32, i32) {
    %c0_i32 = arith.constant 0 : i32
    %c0_i32_0 = arith.constant 0 : i32
    %c0_i32_1 = arith.constant 0 : i32
    return %c0_i32, %c0_i32_0 : i32, i32
  }
  func.func @transform_6(%arg0: i32) -> (i32, i32) {
    %c0_i32 = arith.constant 0 : i32
    %c0_i32_0 = arith.constant 0 : i32
    %c0_i32_1 = arith.constant 0 : i32
    return %c0_i32, %c0_i32_0 : i32, i32
  }
  func.func @transform_7(%arg0: i32) -> (i32, i32) {
    %c0_i32 = arith.constant 0 : i32
    %c0_i32_0 = arith.constant 0 : i32
    %c0_i32_1 = arith.constant 0 : i32
    return %c0_i32, %c0_i32_0 : i32, i32
  }
  func.func @transform_8(%arg0: i32) -> (i32, i32) {
    %c0_i32 = arith.constant 0 : i32
    %c0_i32_0 = arith.constant 0 : i32
    %c0_i32_1 = arith.constant 0 : i32
    return %c0_i32, %c0_i32_0 : i32, i32
  }
  func.func @transform_9(%arg0: i32) -> (i32, i32) {
    %c0_i32 = arith.constant 0 : i32
    %c0_i32_0 = arith.constant 0 : i32
    return %arg0, %c0_i32 : i32, i32
  }
}

</mosaic_0001>

<llo_original>
// kernel: tpu_custom_call.1
$region0: #{tpu_custom_call.1}
  #allocation0 [shape = 'u32[]', space=smem, size = 0x4, offset = 0x4, fixed_abs, tag = 'smem constant byte address 0x4 - core index']
  #allocation1 [shape = 'u32[144,128]{1,0:T(1,128)}', space=vmem, size = 0x12000, scoped, tag = 'internal scratch']
  %s0 = inlined_call_operand.vmem [shape: f32[1,512], index: 0, kind: input, shape index: {}]
  %s1 = inlined_call_operand.vmem [shape: f32[10,1], index: 1, kind: input, shape index: {}]
  %s2 = inlined_call_operand.vmem [shape: f32[10,1], index: 2, kind: input, shape index: {}]
  %s3 = inlined_call_operand.vmem [shape: f32[10,10], index: 3, kind: input, shape index: {}]
  %s4 = inlined_call_operand.vmem [shape: f32[10,1], index: 4, kind: input, shape index: {}]
  %s5 = inlined_call_operand.vmem [shape: f32[10,10], index: 5, kind: input, shape index: {}]
  %s6 = inlined_call_operand.vmem [shape: f32[10,1], index: 6, kind: input, shape index: {}]
  %s7 = inlined_call_operand.vmem [shape: f32[10,128], index: 7, kind: input, shape index: {}]
  %s8 = inlined_call_operand.vmem [shape: f32[1,128], index: 8, kind: input, shape index: {}]
  %s9 = inlined_call_operand.hbm [shape: f32[512,128], index: 9, kind: output, shape index: {}]
  %s10 = sld [smem:[#allocation0]]
  $region69: #{tpu_custom_call.1} parent=0
    _
  %s12 = ssub.s32 1, %s10
  %s13 = scalar_select 0, %s12, %s10
  $region1: #{tpu_custom_call.1} parent=0
    #allocation2 [shape = 'u8[262144]{0}', space=vmem, size = 0x40000, scoped, tag = 'output window, operand 0']
    #allocation3 [shape = 's32[2]{0}', space=sflag, size = 0x8, scoped, tag = 'scoped memory for tpu_custom_call.1']
    %14 = vsyncpa [#allocation3], 0
    %s15 = scalar_lea.sflag [#allocation3], 1
    %16 = vsyncpa %s15, 0
    loop: start=0, step=1, limit=4
    $region2: #{tpu_custom_call.1} parent=1 // loop_pre_header
      _
    $region3: #{tpu_custom_call.1} parent=1 // loop_header
      %s18 = sphi 0, %s22
      %p19 = scmp.ge.s32.totalorder %s18, 4
      %s28 = sphi 0, %s30
      %s31 = sphi 0, %s28
      %s32 = sphi 0, %s31
      %s48 = sphi 0, %s32
      %s52 = sphi 0, %s52
      %s54 = sphi 0, %s52
      %s55 = sphi 0, %s54
      %s69 = sphi 0, %s55
      %s73 = sphi 0, %s73
      %s75 = sphi 0, %s73
      %s76 = sphi 0, %s75
      %s90 = sphi 0, %s76
      %s94 = sphi 0, %s94
      %s96 = sphi 0, %s94
      %s97 = sphi 0, %s96
      %s111 = sphi 0, %s97
      %s115 = sphi 0, %s115
      %s117 = sphi 0, %s115
      %s118 = sphi 0, %s117
      %s132 = sphi 0, %s118
      %s136 = sphi 0, %s136
      %s138 = sphi 0, %s136
      %s139 = sphi 0, %s138
      %s153 = sphi 0, %s139
      %s157 = sphi 0, %s157
      %s159 = sphi 0, %s157
      %s160 = sphi 0, %s159
      %s174 = sphi 0, %s160
      %s178 = sphi 0, %s178
      %s180 = sphi 0, %s178
      %s181 = sphi 0, %s180
      %s195 = sphi 0, %s181
      %s199 = sphi 0, %s199
      %s201 = sphi 0, %s199
      %s202 = sphi 0, %s201
      %s216 = sphi 0, %s202
      %s222 = sphi 0, %s224
      %s225 = sphi 0, %s222
      %s226 = sphi 0, %s225
      %s242 = sphi 0, %s226
    $region4: #{tpu_custom_call.1} parent=1 // loop_header_branch
      %21 = sbr.rel (%p19) target = $region8
    $region5: #{tpu_custom_call.1} parent=1 // loop_body
      %s23 = ssub.s32 %s18, 1
      %s24 = ssub.s32 %s18, 2
      %s25 = sadd.s32 %s18, 1
      %s26 = ssub.s32 %s18, %s25
      %p27 = scmp.eq.s32.totalorder %s26, 0
      %s29 = sadd.s32 %s28, 1
      %s30 = scalar_select %p27, %s28, %s29
      %p33 = pneg %p27
      %p34 = scmp.eq.s32.totalorder %s18, 1
      %p35 = por %p33, %p34
      %p36 = scmp.ne.s32.totalorder %s28, %s31
      %p37 = scmp.eq.s32.totalorder %s18, 0
      %p38 = por %p36, %p37
      %p39 = scmp.ne.s32.totalorder %s28, %s31
      %p40 = scmp.eq.s32.totalorder %s23, 1
      %p41 = por %p39, %p40
      %p42 = scmp.ne.s32.totalorder %s31, %s32
      %p43 = scmp.eq.s32.totalorder %s23, 0
      %p44 = por %p42, %p43
      %p45 = scmp.ne.s32.totalorder %s31, %s32
      %p46 = scmp.eq.s32.totalorder %s24, 1
      %p47 = por %p45, %p46
      %p49 = scmp.ne.s32.totalorder %s32, %s48
      %p50 = scmp.eq.s32.totalorder %s24, 0
      %p51 = por %p49, %p50
      %s53 = sadd.s32 %s52, 1
      %p56 = scmp.eq.s32.totalorder %s18, 1
      %p57 = scmp.ne.s32.totalorder %s52, %s54
      %p58 = scmp.eq.s32.totalorder %s18, 0
      %p59 = por %p57, %p58
      %p60 = scmp.ne.s32.totalorder %s52, %s54
      %p61 = scmp.eq.s32.totalorder %s23, 1
      %p62 = por %p60, %p61
      %p63 = scmp.ne.s32.totalorder %s54, %s55
      %p64 = scmp.eq.s32.totalorder %s23, 0
      %p65 = por %p63, %p64
      %p66 = scmp.ne.s32.totalorder %s54, %s55
      %p67 = scmp.eq.s32.totalorder %s24, 1
      %p68 = por %p66, %p67
      %p70 = scmp.ne.s32.totalorder %s55, %s69
      %p71 = scmp.eq.s32.totalorder %s24, 0
      %p72 = por %p70, %p71
      %s74 = sadd.s32 %s73, 1
      %p77 = scmp.eq.s32.totalorder %s18, 1
      %p78 = scmp.ne.s32.totalorder %s73, %s75
      %p79 = scmp.eq.s32.totalorder %s18, 0
      %p80 = por %p78, %p79
      %p81 = scmp.ne.s32.totalorder %s73, %s75
      %p82 = scmp.eq.s32.totalorder %s23, 1
      %p83 = por %p81, %p82
      %p84 = scmp.ne.s32.totalorder %s75, %s76
      %p85 = scmp.eq.s32.totalorder %s23, 0
      %p86 = por %p84, %p85
      %p87 = scmp.ne.s32.totalorder %s75, %s76
      %p88 = scmp.eq.s32.totalorder %s24, 1
      %p89 = por %p87, %p88
      %p91 = scmp.ne.s32.totalorder %s76, %s90
      %p92 = scmp.eq.s32.totalorder %s24, 0
      %p93 = por %p91, %p92
      %s95 = sadd.s32 %s94, 1
      %p98 = scmp.eq.s32.totalorder %s18, 1
      %p99 = scmp.ne.s32.totalorder %s94, %s96
      %p100 = scmp.eq.s32.totalorder %s18, 0
      %p101 = por %p99, %p100
      %p102 = scmp.ne.s32.totalorder %s94, %s96
      %p103 = scmp.eq.s32.totalorder %s23, 1
      %p104 = por %p102, %p103
      %p105 = scmp.ne.s32.totalorder %s96, %s97
      %p106 = scmp.eq.s32.totalorder %s23, 0
      %p107 = por %p105, %p106
      %p108 = scmp.ne.s32.totalorder %s96, %s97
      %p109 = scmp.eq.s32.totalorder %s24, 1
      %p110 = por %p108, %p109
      %p112 = scmp.ne.s32.totalorder %s97, %s111
      %p113 = scmp.eq.s32.totalorder %s24, 0
      %p114 = por %p112, %p113
      %s116 = sadd.s32 %s115, 1
      %p119 = scmp.eq.s32.totalorder %s18, 1
      %p120 = scmp.ne.s32.totalorder %s115, %s117
      %p121 = scmp.eq.s32.totalorder %s18, 0
      %p122 = por %p120, %p121
      %p123 = scmp.ne.s32.totalorder %s115, %s117
      %p124 = scmp.eq.s32.totalorder %s23, 1
      %p125 = por %p123, %p124
      %p126 = scmp.ne.s32.totalorder %s117, %s118
      %p127 = scmp.eq.s32.totalorder %s23, 0
      %p128 = por %p126, %p127
      %p129 = scmp.ne.s32.totalorder %s117, %s118
      %p130 = scmp.eq.s32.totalorder %s24, 1
      %p131 = por %p129, %p130
      %p133 = scmp.ne.s32.totalorder %s118, %s132
      %p134 = scmp.eq.s32.totalorder %s24, 0
      %p135 = por %p133, %p134
      %s137 = sadd.s32 %s136, 1
      %p140 = scmp.eq.s32.totalorder %s18, 1
      %p141 = scmp.ne.s32.totalorder %s136, %s138
      %p142 = scmp.eq.s32.totalorder %s18, 0
      %p143 = por %p141, %p142
      %p144 = scmp.ne.s32.totalorder %s136, %s138
      %p145 = scmp.eq.s32.totalorder %s23, 1
      %p146 = por %p144, %p145
      %p147 = scmp.ne.s32.totalorder %s138, %s139
      %p148 = scmp.eq.s32.totalorder %s23, 0
      %p149 = por %p147, %p148
      %p150 = scmp.ne.s32.totalorder %s138, %s139
      %p151 = scmp.eq.s32.totalorder %s24, 1
      %p152 = por %p150, %p151
      %p154 = scmp.ne.s32.totalorder %s139, %s153
      %p155 = scmp.eq.s32.totalorder %s24, 0
      %p156 = por %p154, %p155
      %s158 = sadd.s32 %s157, 1
      %p161 = scmp.eq.s32.totalorder %s18, 1
      %p162 = scmp.ne.s32.totalorder %s157, %s159
      %p163 = scmp.eq.s32.totalorder %s18, 0
      %p164 = por %p162, %p163
      %p165 = scmp.ne.s32.totalorder %s157, %s159
      %p166 = scmp.eq.s32.totalorder %s23, 1
      %p167 = por %p165, %p166
      %p168 = scmp.ne.s32.totalorder %s159, %s160
      %p169 = scmp.eq.s32.totalorder %s23, 0
      %p170 = por %p168, %p169
      %p171 = scmp.ne.s32.totalorder %s159, %s160
      %p172 = scmp.eq.s32.totalorder %s24, 1
      %p173 = por %p171, %p172
      %p175 = scmp.ne.s32.totalorder %s160, %s174
      %p176 = scmp.eq.s32.totalorder %s24, 0
      %p177 = por %p175, %p176
      %s179 = sadd.s32 %s178, 1
      %p182 = scmp.eq.s32.totalorder %s18, 1
      %p183 = scmp.ne.s32.totalorder %s178, %s180
      %p184 = scmp.eq.s32.totalorder %s18, 0
      %p185 = por %p183, %p184
      %p186 = scmp.ne.s32.totalorder %s178, %s180
      %p187 = scmp.eq.s32.totalorder %s23, 1
      %p188 = por %p186, %p187
      %p189 = scmp.ne.s32.totalorder %s180, %s181
      %p190 = scmp.eq.s32.totalorder %s23, 0
      %p191 = por %p189, %p190
      %p192 = scmp.ne.s32.totalorder %s180, %s181
      %p193 = scmp.eq.s32.totalorder %s24, 1
      %p194 = por %p192, %p193
      %p196 = scmp.ne.s32.totalorder %s181, %s195
      %p197 = scmp.eq.s32.totalorder %s24, 0
      %p198 = por %p196, %p197
      %s200 = sadd.s32 %s199, 1
      %p203 = scmp.eq.s32.totalorder %s18, 1
      %p204 = scmp.ne.s32.totalorder %s199, %s201
      %p205 = scmp.eq.s32.totalorder %s18, 0
      %p206 = por %p204, %p205
      %p207 = scmp.ne.s32.totalorder %s199, %s201
      %p208 = scmp.eq.s32.totalorder %s23, 1
      %p209 = por %p207, %p208
      %p210 = scmp.ne.s32.totalorder %s201, %s202
      %p211 = scmp.eq.s32.totalorder %s23, 0
      %p212 = por %p210, %p211
      %p213 = scmp.ne.s32.totalorder %s201, %s202
      %p214 = scmp.eq.s32.totalorder %s24, 1
      %p215 = por %p213, %p214
      %p217 = scmp.ne.s32.totalorder %s202, %s216
      %p218 = scmp.eq.s32.totalorder %s24, 0
      %p219 = por %p217, %p218
      %s220 = ssub.s32 %s18, %s25
      %p221 = scmp.eq.s32.totalorder %s220, 0
      %s223 = sadd.s32 %s222, 1
      %s224 = scalar_select %p221, %s222, %s223
      %p227 = pneg %p221
      %p228 = scmp.eq.s32.totalorder %s18, 1
      %p229 = por %p227, %p228
      %p230 = scmp.ne.s32.totalorder %s222, %s225
      %p231 = scmp.eq.s32.totalorder %s18, 0
      %p232 = por %p230, %p231
      %p233 = scmp.ne.s32.totalorder %s222, %s225
      %p234 = scmp.eq.s32.totalorder %s23, 1
      %p235 = por %p233, %p234
      %p236 = scmp.ne.s32.totalorder %s225, %s226
      %p237 = scmp.eq.s32.totalorder %s23, 0
      %p238 = por %p236, %p237
      %p239 = scmp.ne.s32.totalorder %s225, %s226
      %p240 = scmp.eq.s32.totalorder %s24, 1
      %p241 = por %p239, %p240
      %p243 = scmp.ne.s32.totalorder %s226, %s242
      %p244 = scmp.eq.s32.totalorder %s24, 0
      %p245 = por %p243, %p244
      %p246 = scmp.le.s32.totalorder 1, %s18
      %p247 = scmp.lt.s32.totalorder %s18, 3
      %p248 = pnand %p246, %p247
      %p249 = pneg %p248
      // Predicated region
      $region9: #{tpu_custom_call.1} parent=5 // pred_check
        _
      $region10: #{tpu_custom_call.1} parent=5 // pred_check_branch
        %251 = sbr.rel (%p248) target = $region12
      $region11: #{tpu_custom_call.1} parent=5 // pred_region
        %s252 = ssub.s32 %s18, 1
        // Predicated region
        $region13: #{tpu_custom_call.1} parent=11 // pred_check
          %p253 = pneg %p65
        $region14: #{tpu_custom_call.1} parent=11 // pred_check_branch
          %255 = sbr.rel (%p253) target = $region16
        $region15: #{tpu_custom_call.1} parent=11 // pred_region
          _
        $region16: #{tpu_custom_call.1} parent=11 // pred_fallthru
          _
        // Predicated region
        $region17: #{tpu_custom_call.1} parent=11 // pred_check
          %p256 = pneg %p86
        $region18: #{tpu_custom_call.1} parent=11 // pred_check_branch
          %258 = sbr.rel (%p256) target = $region20
        $region19: #{tpu_custom_call.1} parent=11 // pred_region
          _
        $region20: #{tpu_custom_call.1} parent=11 // pred_fallthru
          _
        // Predicated region
        $region21: #{tpu_custom_call.1} parent=11 // pred_check
          %p259 = pneg %p107
        $region22: #{tpu_custom_call.1} parent=11 // pred_check_branch
          %261 = sbr.rel (%p259) target = $region24
        $region23: #{tpu_custom_call.1} parent=11 // pred_region
          _
        $region24: #{tpu_custom_call.1} parent=11 // pred_fallthru
          _
        // Predicated region
        $region25: #{tpu_custom_call.1} parent=11 // pred_check
          %p262 = pneg %p128
        $region26: #{tpu_custom_call.1} parent=11 // pred_check_branch
          %264 = sbr.rel (%p262) target = $region28
        $region27: #{tpu_custom_call.1} parent=11 // pred_region
          _
        $region28: #{tpu_custom_call.1} parent=11 // pred_fallthru
          _
        // Predicated region
        $region29: #{tpu_custom_call.1} parent=11 // pred_check
          %p265 = pneg %p149
        $region30: #{tpu_custom_call.1} parent=11 // pred_check_branch
          %267 = sbr.rel (%p265) target = $region32
        $region31: #{tpu_custom_call.1} parent=11 // pred_region
          _
        $region32: #{tpu_custom_call.1} parent=11 // pred_fallthru
          _
        // Predicated region
        $region33: #{tpu_custom_call.1} parent=11 // pred_check
          %p268 = pneg %p170
        $region34: #{tpu_custom_call.1} parent=11 // pred_check_branch
          %270 = sbr.rel (%p268) target = $region36
        $region35: #{tpu_custom_call.1} parent=11 // pred_region
          _
        $region36: #{tpu_custom_call.1} parent=11 // pred_fallthru
          _
        // Predicated region
        $region37: #{tpu_custom_call.1} parent=11 // pred_check
          %p271 = pneg %p191
        $region38: #{tpu_custom_call.1} parent=11 // pred_check_branch
          %273 = sbr.rel (%p271) target = $region40
        $region39: #{tpu_custom_call.1} parent=11 // pred_region
          _
        $region40: #{tpu_custom_call.1} parent=11 // pred_fallthru
          _
        // Predicated region
        $region41: #{tpu_custom_call.1} parent=11 // pred_check
          %p274 = pneg %p212
        $region42: #{tpu_custom_call.1} parent=11 // pred_check_branch
          %276 = sbr.rel (%p274) target = $region44
        $region43: #{tpu_custom_call.1} parent=11 // pred_region
          _
        $region44: #{tpu_custom_call.1} parent=11 // pred_fallthru
          _
      $region12: #{tpu_custom_call.1} parent=5 // pred_fallthru
        _
      %p277 = scmp.lt.s32.totalorder %s18, 2
      // Predicated region
      $region45: #{tpu_custom_call.1} parent=5 // pred_check
        %p278 = pneg %p277
      $region46: #{tpu_custom_call.1} parent=5 // pred_check_branch
        %280 = sbr.rel (%p278) target = $region48
      $region47: #{tpu_custom_call.1} parent=5 // pred_region
        // Predicated region
        $region49: #{tpu_custom_call.1} parent=47 // pred_check
          %p281 = pneg %p38
        $region50: #{tpu_custom_call.1} parent=47 // pred_check_branch
          %283 = sbr.rel (%p281) target = $region52
        $region51: #{tpu_custom_call.1} parent=47 // pred_region
          %s284 = smul.u32 2, %s18
          %p285 = scmp.lt.s32.totalorder %s284, 3
          %s286 = scalar_select %p285, %s284, 3
          %s287 = scalar_lea.vmem %s0, %s286
          %s288 = smul.u32 2, %s18
        $region52: #{tpu_custom_call.1} parent=47 // pred_fallthru
          _
      $region48: #{tpu_custom_call.1} parent=5 // pred_fallthru
        _
      %p289 = scmp.le.s32.totalorder 1, %s18
      %p290 = scmp.lt.s32.totalorder %s18, 3
      %p291 = pnand %p289, %p290
      %p292 = pneg %p291
      // Predicated region
      $region53: #{tpu_custom_call.1} parent=5 // pred_check
        _
      $region54: #{tpu_custom_call.1} parent=5 // pred_check_branch
        %294 = sbr.rel (%p291) target = $region56
      $region55: #{tpu_custom_call.1} parent=5 // pred_region
        %s295 = ssub.s32 %s18, 1
        %s296 = smul.u32 2, %s23
        %p297 = scmp.lt.s32.totalorder %s296, 3
        %s298 = scalar_select %p297, %s296, 3
        %s299 = scalar_lea.vmem %s0, %s298
        %p300 = pneg %p44
        %p301 = pneg %p41
        %p302 = pneg %p65
        %p303 = pneg %p62
        %p304 = pneg %p86
        %p305 = pneg %p83
        %p306 = pneg %p107
        %p307 = pneg %p104
        %p308 = pneg %p128
        %p309 = pneg %p125
        %p310 = pneg %p149
        %p311 = pneg %p146
        %p312 = pneg %p170
        %p313 = pneg %p167
        %p314 = pneg %p191
        %p315 = pneg %p188
        %p316 = pneg %p212
        %p317 = pneg %p209
        %p318 = pneg %p238
        %p319 = pneg %p235
        %s320 = sand.u32 %s225, 1
        %s321 = scalar_lea.sflag [#allocation3], %s320
        %s322 = sand.u32 %s225, 1
        %s323 = smul.addr %s322, 256
        %s324 = scalar_lea.vmem [#allocation2], %s323
        %s325 = smul.u32 2, %s23
        %p326 = scmp.lt.s32.totalorder %s325, 3
        %s327 = scalar_select %p326, %s325, 3
        %s328 = scalar_lea.vmem %s0, %s327
        %s329 = smul.u32 2, %s23
        %s330 = smul.u32 32, %s23
        %v331 = vld [vmem:[%s328] sm:$0x3]
        %v332 = vld [vmem:[%s1] sm:$0xff]
        %v333 = vld [vmem:[%s1 + $0x8] sm:$0x3]
        %335 = vset.pattern.permute.xlu0 0
        %336 = vperm.xlu0 %335, %v332
        %v337 = vpop.permute.xlu0 %336
        %340 = vset.pattern.permute.xlu0 0
        %341 = vperm.xlu0 %340, %v333
        %v342 = vpop.permute.xlu0 %341
        %v345 = vlaneseq
        %v346 = vshrl.u32 %v345, 7
        %v347 = vsub.s32 0, %v346
        %v348 = vrot.slane %v331, %v347
        %v349 = vlaneseq
        %v350 = vshrl.u32 %v349, 7
        %v351 = vsub.s32 1, %v350
        %v352 = vrot.slane %v331, %v351
        %v355 = vmul.f32 %v337, %v348
        %v356 = vmul.f32 %v337, %v352
        %v357 = vmul.f32 %v342, %v348
        %v358 = vmul.f32 %v342, %v352
        %v359 = vld [vmem:[%s2] sm:$0xff]
        %v360 = vld [vmem:[%s2 + $0x8] sm:$0x3]
        %362 = vset.pattern.permute.xlu0 0
        %363 = vperm.xlu0 %362, %v359
        %v364 = vpop.permute.xlu0 %363
        %367 = vset.pattern.permute.xlu0 0
        %368 = vperm.xlu0 %367, %v360
        %v369 = vpop.permute.xlu0 %368
        %v371 = vadd.f32 %v355, %v364
        %v372 = vadd.f32 %v356, %v364
        %v373 = vadd.f32 %v357, %v369
        %v374 = vadd.f32 %v358, %v369
        %v375 = vmul.f32 %v371, 0.5
        %v376 = vmul.f32 %v372, 0.5
        %v377 = vmul.f32 %v373, 0.5
        %v378 = vmul.f32 %v374, 0.5
        %v379 = vtanh.pop %v375
        %v380 = vtanh.pop %v376
        %v381 = vtanh.pop %v377
        %v382 = vtanh.pop %v378
        %v383 = vmul.f32 %v379, 0.5
        %v384 = vmul.f32 %v380, 0.5
        %v385 = vmul.f32 %v381, 0.5
        %v386 = vmul.f32 %v382, 0.5
        %v387 = vadd.f32 %v383, 0.5
        %v388 = vadd.f32 %v384, 0.5
        %v389 = vadd.f32 %v385, 0.5
        %v390 = vadd.f32 %v386, 0.5
        %v391 = vmul.f32 %v371, %v387
        %v392 = vmul.f32 %v372, %v388
        %v393 = vmul.f32 %v373, %v389
        %v394 = vmul.f32 %v374, %v390
        %v395 = vld [vmem:[%s3] sm:$0xff]
        %v396 = vld [vmem:[%s3 + $0x8] sm:$0x3]
        %v397 = vld [vmem:[%s4] sm:$0xff]
        %v398 = vld [vmem:[%s4 + $0x8] sm:$0x3]
        %400 = vset.pattern.permute.xlu0 0
        %401 = vperm.xlu0 %400, %v397
        %v402 = vpop.permute.xlu0 %401
        %405 = vset.pattern.permute.xlu0 0
        %406 = vperm.xlu0 %405, %v398
        %v407 = vpop.permute.xlu0 %406
        %vm409 = vcmask 80896
        %v411 = vsel %vm409, %v395, 0
        %v414 = vsel %vm409, %v396, 0
        %vm416 = vcmask 1041408
        %v418 = vsel %vm416, %v393, 0
        %v421 = vsel %vm416, %v394, 0
        %423 = vmatprep.subr.mxu0 %v392
        %424 = vmatpush1.msra.mxu0 %v391
        %425 = vmatprep.subr.mxu0 %v421
        %426 = vmatpush1.msra.mxu0 %v418
        %427 = vmatprep.subr.mxu0 0.0
        %428 = vmatpush1.msra.mxu0 0.0
        %429 = vmatprep.subr.mxu0 0.0
        %430 = vmatpush1.msra.mxu0 0.0
        %431 = vmatprep.subr.mxu0 0.0
        %432 = vmatpush1.msra.mxu0 0.0
        %433 = vmatprep.subr.mxu0 0.0
        %434 = vmatpush1.msra.mxu0 0.0
        %435 = vmatprep.subr.mxu0 0.0
        %436 = vmatpush1.msra.mxu0 0.0
        %437 = vmatprep.subr.mxu0 0.0
        %438 = vmatpush1.msra.mxu0 0.0
        %439 = vmatprep.subr.mxu0 0.0
        %440 = vmatpush1.msra.mxu0 0.0
        %441 = vmatprep.subr.mxu0 0.0
        %442 = vmatpush1.msra.mxu0 0.0
        %443 = vmatprep.subr.mxu0 0.0
        %444 = vmatpush1.msra.mxu0 0.0
        %445 = vmatprep.subr.mxu0 0.0
        %446 = vmatpush1.msra.mxu0 0.0
        %447 = vmatprep.subr.mxu0 0.0
        %448 = vmatpush1.msra.mxu0 0.0
        %449 = vmatprep.subr.mxu0 0.0
        %450 = vmatpush1.msra.mxu0 0.0
        %451 = vmatprep.subr.mxu0 0.0
        %452 = vmatpush1.msra.mxu0 0.0
        %453 = vmatprep.subr.mxu0 0.0
        %454 = vmatpush1.msra.mxu0 0.0
        %455 = vmatprep.subr.mxu0 0.0
        %456 = vmatpush1.msra.mxu0 0.0
        %457 = vmatprep.subr.mxu0 0.0
        %458 = vmatpush1.msra.mxu0 0.0
        %459 = vmatprep.subr.mxu0 0.0
        %460 = vmatpush1.msra.mxu0 0.0
        %461 = vmatprep.subr.mxu0 0.0
        %462 = vmatpush1.msra.mxu0 0.0
        %463 = vmatprep.subr.mxu0 0.0
        %464 = vmatpush1.msra.mxu0 0.0
        %465 = vmatprep.subr.mxu0 0.0
        %466 = vmatpush1.msra.mxu0 0.0
        %467 = vmatprep.subr.mxu0 0.0
        %468 = vmatpush1.msra.mxu0 0.0
        %469 = vmatprep.subr.mxu0 0.0
        %470 = vmatpush1.msra.mxu0 0.0
        %471 = vmatprep.subr.mxu0 0.0
        %472 = vmatpush1.msra.mxu0 0.0
        %473 = vmatprep.subr.mxu0 0.0
        %474 = vmatpush1.msra.mxu0 0.0
        %475 = vmatprep.subr.mxu0 0.0
        %476 = vmatpush1.msra.mxu0 0.0
        %477 = vmatprep.subr.mxu0 0.0
        %478 = vmatpush1.msra.mxu0 0.0
        %479 = vmatprep.subr.mxu0 0.0
        %480 = vmatpush1.msra.mxu0 0.0
        %481 = vmatprep.subr.mxu0 0.0
        %482 = vmatpush1.msra.mxu0 0.0
        %483 = vmatprep.subr.mxu0 0.0
        %484 = vmatpush1.msra.mxu0 0.0
        %485 = vmatprep.subr.mxu0 0.0
        %486 = vmatpush1.msra.mxu0 0.0
        %487 = vmatprep.mubr.f32.mxu0 0.0
        %488 = vmatmul.mubr.f32.gmra.mrb[0].mxu0 %v411
        %v489 = vpop.f32.mrb[0].mxu0
        %v490 = vadd.f32 %v402, %v489
        %v491 = vpop.f32.mrb[0].mxu0
        %v492 = vadd.f32 %v402, %v491
        %493 = vmatprep.mubr.f32.mxu0 0.0
        %494 = vmatmul.mubr.f32.gmra.mrb[0].mxu0 %v414
        %v495 = vpop.f32.mrb[0].mxu0
        %v496 = vadd.f32 %v407, %v495
        %v497 = vpop.f32.mrb[0].mxu0
        %v498 = vadd.f32 %v407, %v497
        %499 = vdwg.mxu0
        %v500 = vmul.f32 %v490, 0.5
        %v501 = vmul.f32 %v492, 0.5
        %v502 = vmul.f32 %v496, 0.5
        %v503 = vmul.f32 %v498, 0.5
        %v504 = vtanh.pop %v500
        %v505 = vtanh.pop %v501
        %v506 = vtanh.pop %v502
        %v507 = vtanh.pop %v503
        %v508 = vmul.f32 %v504, 0.5
        %v509 = vmul.f32 %v505, 0.5
        %v510 = vmul.f32 %v506, 0.5
        %v511 = vmul.f32 %v507, 0.5
        %v512 = vadd.f32 %v508, 0.5
        %v513 = vadd.f32 %v509, 0.5
        %v514 = vadd.f32 %v510, 0.5
        %v515 = vadd.f32 %v511, 0.5
        %v516 = vmul.f32 %v490, %v512
        %v517 = vmul.f32 %v492, %v513
        %v518 = vmul.f32 %v496, %v514
        %v519 = vmul.f32 %v498, %v515
        %v520 = vld [vmem:[%s5] sm:$0xff]
        %v521 = vld [vmem:[%s5 + $0x8] sm:$0x3]
        %v522 = vld [vmem:[%s6] sm:$0xff]
        %v523 = vld [vmem:[%s6 + $0x8] sm:$0x3]
        %525 = vset.pattern.permute.xlu0 0
        %526 = vperm.xlu0 %525, %v522
        %v527 = vpop.permute.xlu0 %526
        %530 = vset.pattern.permute.xlu0 0
        %531 = vperm.xlu0 %530, %v523
        %v532 = vpop.permute.xlu0 %531
        %v535 = vsel %vm409, %v520, 0
        %v538 = vsel %vm409, %v521, 0
        %v541 = vsel %vm416, %v518, 0
        %v544 = vsel %vm416, %v519, 0
        %546 = vmatprep.subr.mxu0 %v517
        %547 = vmatpush1.msra.mxu0 %v516
        %548 = vmatprep.subr.mxu0 %v544
        %549 = vmatpush1.msra.mxu0 %v541
        %550 = vmatprep.subr.mxu0 0.0
        %551 = vmatpush1.msra.mxu0 0.0
        %552 = vmatprep.subr.mxu0 0.0
        %553 = vmatpush1.msra.mxu0 0.0
        %554 = vmatprep.subr.mxu0 0.0
        %555 = vmatpush1.msra.mxu0 0.0
        %556 = vmatprep.subr.mxu0 0.0
        %557 = vmatpush1.msra.mxu0 0.0
        %558 = vmatprep.subr.mxu0 0.0
        %559 = vmatpush1.msra.mxu0 0.0
        %560 = vmatprep.subr.mxu0 0.0
        %561 = vmatpush1.msra.mxu0 0.0
        %562 = vmatprep.subr.mxu0 0.0
        %563 = vmatpush1.msra.mxu0 0.0
        %564 = vmatprep.subr.mxu0 0.0
        %565 = vmatpush1.msra.mxu0 0.0
        %566 = vmatprep.subr.mxu0 0.0
        %567 = vmatpush1.msra.mxu0 0.0
        %568 = vmatprep.subr.mxu0 0.0
        %569 = vmatpush1.msra.mxu0 0.0
        %570 = vmatprep.subr.mxu0 0.0
        %571 = vmatpush1.msra.mxu0 0.0
        %572 = vmatprep.subr.mxu0 0.0
        %573 = vmatpush1.msra.mxu0 0.0
        %574 = vmatprep.subr.mxu0 0.0
        %575 = vmatpush1.msra.mxu0 0.0
        %576 = vmatprep.subr.mxu0 0.0
        %577 = vmatpush1.msra.mxu0 0.0
        %578 = vmatprep.subr.mxu0 0.0
        %579 = vmatpush1.msra.mxu0 0.0
        %580 = vmatprep.subr.mxu0 0.0
        %581 = vmatpush1.msra.mxu0 0.0
        %582 = vmatprep.subr.mxu0 0.0
        %583 = vmatpush1.msra.mxu0 0.0
        %584 = vmatprep.subr.mxu0 0.0
        %585 = vmatpush1.msra.mxu0 0.0
        %586 = vmatprep.subr.mxu0 0.0
        %587 = vmatpush1.msra.mxu0 0.0
        %588 = vmatprep.subr.mxu0 0.0
        %589 = vmatpush1.msra.mxu0 0.0
        %590 = vmatprep.subr.mxu0 0.0
        %591 = vmatpush1.msra.mxu0 0.0
        %592 = vmatprep.subr.mxu0 0.0
        %593 = vmatpush1.msra.mxu0 0.0
        %594 = vmatprep.subr.mxu0 0.0
        %595 = vmatpush1.msra.mxu0 0.0
        %596 = vmatprep.subr.mxu0 0.0
        %597 = vmatpush1.msra.mxu0 0.0
        %598 = vmatprep.subr.mxu0 0.0
        %599 = vmatpush1.msra.mxu0 0.0
        %600 = vmatprep.subr.mxu0 0.0
        %601 = vmatpush1.msra.mxu0 0.0
        %602 = vmatprep.subr.mxu0 0.0
        %603 = vmatpush1.msra.mxu0 0.0
        %604 = vmatprep.subr.mxu0 0.0
        %605 = vmatpush1.msra.mxu0 0.0
        %606 = vmatprep.subr.mxu0 0.0
        %607 = vmatpush1.msra.mxu0 0.0
        %608 = vmatprep.subr.mxu0 0.0
        %609 = vmatpush1.msra.mxu0 0.0
        %610 = vmatprep.mubr.f32.mxu0 0.0
        %611 = vmatmul.mubr.f32.gmra.mrb[0].mxu0 %v535
        %v612 = vpop.f32.mrb[0].mxu0
        %v613 = vadd.f32 %v527, %v612
        %v614 = vpop.f32.mrb[0].mxu0
        %v615 = vadd.f32 %v527, %v614
        %616 = vmatprep.mubr.f32.mxu0 0.0
        %617 = vmatmul.mubr.f32.gmra.mrb[0].mxu0 %v538
        %v618 = vpop.f32.mrb[0].mxu0
        %v619 = vadd.f32 %v532, %v618
        %v620 = vpop.f32.mrb[0].mxu0
        %v621 = vadd.f32 %v532, %v620
        %622 = vdwg.mxu0
        %v623 = vmul.f32 %v613, 0.5
        %v624 = vmul.f32 %v615, 0.5
        %v625 = vmul.f32 %v619, 0.5
        %v626 = vmul.f32 %v621, 0.5
        %v627 = vtanh.pop %v623
        %v628 = vtanh.pop %v624
        %v629 = vtanh.pop %v625
        %v630 = vtanh.pop %v626
        %v631 = vmul.f32 %v627, 0.5
        %v632 = vmul.f32 %v628, 0.5
        %v633 = vmul.f32 %v629, 0.5
        %v634 = vmul.f32 %v630, 0.5
        %v635 = vadd.f32 %v631, 0.5
        %v636 = vadd.f32 %v632, 0.5
        %v637 = vadd.f32 %v633, 0.5
        %v638 = vadd.f32 %v634, 0.5
        %v639 = vmul.f32 %v613, %v635
        %v640 = vmul.f32 %v615, %v636
        %v641 = vmul.f32 %v619, %v637
        %v642 = vmul.f32 %v621, %v638
        %v643 = vld [vmem:[%s7] sm:$0xff]
        %v644 = vld [vmem:[%s7 + $0x8] sm:$0x3]
        %v645 = vld [vmem:[%s8] sm:$0x1]
        %v647 = vlaneseq
        %v648 = vshrl.u32 %v647, 7
        %v649 = vsub.s32 0, %v648
        %v650 = vrot.slane %v645, %v649
        %652 = vxpose.xlu0.b32.start [1/16] %v639, 128
        %653 = vxpose.xlu0.b32.cont [2/16] %v641, 128
        %654 = vxpose.xlu0.b32.cont [3/16] 0.0, 128
        %655 = vxpose.xlu0.b32.cont [4/16] 0.0, 128
        %656 = vxpose.xlu0.b32.cont [5/16] 0.0, 128
        %657 = vxpose.xlu0.b32.cont [6/16] 0.0, 128
        %658 = vxpose.xlu0.b32.cont [7/16] 0.0, 128
        %659 = vxpose.xlu0.b32.cont [8/16] 0.0, 128
        %660 = vxpose.xlu0.b32.cont [9/16] 0.0, 128
        %661 = vxpose.xlu0.b32.cont [10/16] 0.0, 128
        %662 = vxpose.xlu0.b32.cont [11/16] 0.0, 128
        %663 = vxpose.xlu0.b32.cont [12/16] 0.0, 128
        %664 = vxpose.xlu0.b32.cont [13/16] 0.0, 128
        %665 = vxpose.xlu0.b32.cont [14/16] 0.0, 128
        %666 = vxpose.xlu0.b32.cont [15/16] 0.0, 128
        %667 = vxpose.xlu0.b32.end [16/16] 0.0, 128
        %v668 = vpop.trf.xlu0
        %v669 = vpop.trf.xlu0
        %v670 = vpop.trf.xlu0
        %v671 = vpop.trf.xlu0
        %v672 = vpop.trf.xlu0
        %v673 = vpop.trf.xlu0
        %v674 = vpop.trf.xlu0
        %v675 = vpop.trf.xlu0
        %v676 = vpop.trf.xlu0
        %v677 = vpop.trf.xlu0
        %v678 = vpop.trf.xlu0
        %v679 = vpop.trf.xlu0
        %v680 = vpop.trf.xlu0
        %v681 = vpop.trf.xlu0
        %v682 = vpop.trf.xlu0
        %v683 = vpop.trf.xlu0
        %684 = vxpose.xlu0.b32.start [1/16] %v640, 128
        %685 = vxpose.xlu0.b32.cont [2/16] %v642, 128
        %686 = vxpose.xlu0.b32.cont [3/16] 0.0, 128
        %687 = vxpose.xlu0.b32.cont [4/16] 0.0, 128
        %688 = vxpose.xlu0.b32.cont [5/16] 0.0, 128
        %689 = vxpose.xlu0.b32.cont [6/16] 0.0, 128
        %690 = vxpose.xlu0.b32.cont [7/16] 0.0, 128
        %691 = vxpose.xlu0.b32.cont [8/16] 0.0, 128
        %692 = vxpose.xlu0.b32.cont [9/16] 0.0, 128
        %693 = vxpose.xlu0.b32.cont [10/16] 0.0, 128
        %694 = vxpose.xlu0.b32.cont [11/16] 0.0, 128
        %695 = vxpose.xlu0.b32.cont [12/16] 0.0, 128
        %696 = vxpose.xlu0.b32.cont [13/16] 0.0, 128
        %697 = vxpose.xlu0.b32.cont [14/16] 0.0, 128
        %698 = vxpose.xlu0.b32.cont [15/16] 0.0, 128
        %699 = vxpose.xlu0.b32.end [16/16] 0.0, 128
        %v700 = vpop.trf.xlu0
        %v701 = vpop.trf.xlu0
        %v702 = vpop.trf.xlu0
        %v703 = vpop.trf.xlu0
        %v704 = vpop.trf.xlu0
        %v705 = vpop.trf.xlu0
        %v706 = vpop.trf.xlu0
        %v707 = vpop.trf.xlu0
        %v708 = vpop.trf.xlu0
        %v709 = vpop.trf.xlu0
        %v710 = vpop.trf.xlu0
        %v711 = vpop.trf.xlu0
        %v712 = vpop.trf.xlu0
        %v713 = vpop.trf.xlu0
        %v714 = vpop.trf.xlu0
        %v715 = vpop.trf.xlu0
        %v717 = vsel %vm409, %v668, 0
        %v720 = vsel %vm409, %v669, 0
        %v723 = vsel %vm409, %v670, 0
        %v726 = vsel %vm409, %v671, 0
        %v729 = vsel %vm409, %v672, 0
        %v732 = vsel %vm409, %v673, 0
        %v735 = vsel %vm409, %v674, 0
        %v738 = vsel %vm409, %v675, 0
        %v741 = vsel %vm409, %v676, 0
        %v744 = vsel %vm409, %v677, 0
        %v747 = vsel %vm409, %v678, 0
        %v750 = vsel %vm409, %v679, 0
        %v753 = vsel %vm409, %v680, 0
        %v756 = vsel %vm409, %v681, 0
        %v759 = vsel %vm409, %v682, 0
        %v762 = vsel %vm409, %v683, 0
        %v765 = vsel %vm409, %v700, 0
        %v768 = vsel %vm409, %v701, 0
        %v771 = vsel %vm409, %v702, 0
        %v774 = vsel %vm409, %v703, 0
        %v777 = vsel %vm409, %v704, 0
        %v780 = vsel %vm409, %v705, 0
        %v783 = vsel %vm409, %v706, 0
        %v786 = vsel %vm409, %v707, 0
        %v789 = vsel %vm409, %v708, 0
        %v792 = vsel %vm409, %v709, 0
        %v795 = vsel %vm409, %v710, 0
        %v798 = vsel %vm409, %v711, 0
        %v801 = vsel %vm409, %v712, 0
        %v804 = vsel %vm409, %v713, 0
        %v807 = vsel %vm409, %v714, 0
        %v810 = vsel %vm409, %v715, 0
        %v813 = vsel %vm416, %v644, 0
        %815 = vmatprep.subr.mxu0 0.0
        %816 = vmatpush1.msra.mxu0 %v643
        %817 = vmatprep.subr.mxu0 0.0
        %818 = vmatpush1.msra.mxu0 %v813
        %819 = vmatprep.subr.mxu0 0.0
        %820 = vmatpush1.msra.mxu0 0.0
        %821 = vmatprep.subr.mxu0 0.0
        %822 = vmatpush1.msra.mxu0 0.0
        %823 = vmatprep.subr.mxu0 0.0
        %824 = vmatpush1.msra.mxu0 0.0
        %825 = vmatprep.subr.mxu0 0.0
        %826 = vmatpush1.msra.mxu0 0.0
        %827 = vmatprep.subr.mxu0 0.0
        %828 = vmatpush1.msra.mxu0 0.0
        %829 = vmatprep.subr.mxu0 0.0
        %830 = vmatpush1.msra.mxu0 0.0
        %831 = vmatprep.subr.mxu0 0.0
        %832 = vmatpush1.msra.mxu0 0.0
        %833 = vmatprep.subr.mxu0 0.0
        %834 = vmatpush1.msra.mxu0 0.0
        %835 = vmatprep.subr.mxu0 0.0
        %836 = vmatpush1.msra.mxu0 0.0
        %837 = vmatprep.subr.mxu0 0.0
        %838 = vmatpush1.msra.mxu0 0.0
        %839 = vmatprep.subr.mxu0 0.0
        %840 = vmatpush1.msra.mxu0 0.0
        %841 = vmatprep.subr.mxu0 0.0
        %842 = vmatpush1.msra.mxu0 0.0
        %843 = vmatprep.subr.mxu0 0.0
        %844 = vmatpush1.msra.mxu0 0.0
        %845 = vmatprep.subr.mxu0 0.0
        %846 = vmatpush1.msra.mxu0 0.0
        %847 = vmatprep.subr.mxu0 0.0
        %848 = vmatpush1.msra.mxu0 0.0
        %849 = vmatprep.subr.mxu0 0.0
        %850 = vmatpush1.msra.mxu0 0.0
        %851 = vmatprep.subr.mxu0 0.0
        %852 = vmatpush1.msra.mxu0 0.0
        %853 = vmatprep.subr.mxu0 0.0
        %854 = vmatpush1.msra.mxu0 0.0
        %855 = vmatprep.subr.mxu0 0.0
        %856 = vmatpush1.msra.mxu0 0.0
        %857 = vmatprep.subr.mxu0 0.0
        %858 = vmatpush1.msra.mxu0 0.0
        %859 = vmatprep.subr.mxu0 0.0
        %860 = vmatpush1.msra.mxu0 0.0
        %861 = vmatprep.subr.mxu0 0.0
        %862 = vmatpush1.msra.mxu0 0.0
        %863 = vmatprep.subr.mxu0 0.0
        %864 = vmatpush1.msra.mxu0 0.0
        %865 = vmatprep.subr.mxu0 0.0
        %866 = vmatpush1.msra.mxu0 0.0
        %867 = vmatprep.subr.mxu0 0.0
        %868 = vmatpush1.msra.mxu0 0.0
        %869 = vmatprep.subr.mxu0 0.0
        %870 = vmatpush1.msra.mxu0 0.0
        %871 = vmatprep.subr.mxu0 0.0
        %872 = vmatpush1.msra.mxu0 0.0
        %873 = vmatprep.subr.mxu0 0.0
        %874 = vmatpush1.msra.mxu0 0.0
        %875 = vmatprep.subr.mxu0 0.0
        %876 = vmatpush1.msra.mxu0 0.0
        %877 = vmatprep.subr.mxu0 0.0
        %878 = vmatpush1.msra.mxu0 0.0
        %879 = vmatprep.mubr.f32.mxu0 0.0
        %880 = vmatmul.mubr.f32.gmra.mrb[0].mxu0 %v717
        %v881 = vpop.f32.mrb[0].mxu0
        %v882 = vadd.f32 %v650, %v881
        %v883 = vpop.f32.mrb[0].mxu0
        %884 = vmatprep.mubr.f32.mxu0 0.0
        %885 = vmatmul.mubr.f32.gmra.mrb[0].mxu0 %v720
        %v886 = vpop.f32.mrb[0].mxu0
        %v887 = vadd.f32 %v650, %v886
        %v888 = vpop.f32.mrb[0].mxu0
        %889 = vmatprep.mubr.f32.mxu0 0.0
        %890 = vmatmul.mubr.f32.gmra.mrb[0].mxu0 %v723
        %v891 = vpop.f32.mrb[0].mxu0
        %v892 = vadd.f32 %v650, %v891
        %v893 = vpop.f32.mrb[0].mxu0
        %894 = vmatprep.mubr.f32.mxu0 0.0
        %895 = vmatmul.mubr.f32.gmra.mrb[0].mxu0 %v726
        %v896 = vpop.f32.mrb[0].mxu0
        %v897 = vadd.f32 %v650, %v896
        %v898 = vpop.f32.mrb[0].mxu0
        %899 = vmatprep.mubr.f32.mxu0 0.0
        %900 = vmatmul.mubr.f32.gmra.mrb[0].mxu0 %v729
        %v901 = vpop.f32.mrb[0].mxu0
        %v902 = vadd.f32 %v650, %v901
        %v903 = vpop.f32.mrb[0].mxu0
        %904 = vmatprep.mubr.f32.mxu0 0.0
        %905 = vmatmul.mubr.f32.gmra.mrb[0].mxu0 %v732
        %v906 = vpop.f32.mrb[0].mxu0
        %v907 = vadd.f32 %v650, %v906
        %v908 = vpop.f32.mrb[0].mxu0
        %909 = vmatprep.mubr.f32.mxu0 0.0
        %910 = vmatmul.mubr.f32.gmra.mrb[0].mxu0 %v735
        %v911 = vpop.f32.mrb[0].mxu0
        %v912 = vadd.f32 %v650, %v911
        %v913 = vpop.f32.mrb[0].mxu0
        %914 = vmatprep.mubr.f32.mxu0 0.0
        %915 = vmatmul.mubr.f32.gmra.mrb[0].mxu0 %v738
        %v916 = vpop.f32.mrb[0].mxu0
        %v917 = vadd.f32 %v650, %v916
        %v918 = vpop.f32.mrb[0].mxu0
        %919 = vmatprep.mubr.f32.mxu0 0.0
        %920 = vmatmul.mubr.f32.gmra.mrb[0].mxu0 %v741
        %v921 = vpop.f32.mrb[0].mxu0
        %v922 = vadd.f32 %v650, %v921
        %v923 = vpop.f32.mrb[0].mxu0
        %924 = vmatprep.mubr.f32.mxu0 0.0
        %925 = vmatmul.mubr.f32.gmra.mrb[0].mxu0 %v744
        %v926 = vpop.f32.mrb[0].mxu0
        %v927 = vadd.f32 %v650, %v926
        %v928 = vpop.f32.mrb[0].mxu0
        %929 = vmatprep.mubr.f32.mxu0 0.0
        %930 = vmatmul.mubr.f32.gmra.mrb[0].mxu0 %v747
        %v931 = vpop.f32.mrb[0].mxu0
        %v932 = vadd.f32 %v650, %v931
        %v933 = vpop.f32.mrb[0].mxu0
        %934 = vmatprep.mubr.f32.mxu0 0.0
        %935 = vmatmul.mubr.f32.gmra.mrb[0].mxu0 %v750
        %v936 = vpop.f32.mrb[0].mxu0
        %v937 = vadd.f32 %v650, %v936
        %v938 = vpop.f32.mrb[0].mxu0
        %939 = vmatprep.mubr.f32.mxu0 0.0
        %940 = vmatmul.mubr.f32.gmra.mrb[0].mxu0 %v753
        %v941 = vpop.f32.mrb[0].mxu0
        %v942 = vadd.f32 %v650, %v941
        %v943 = vpop.f32.mrb[0].mxu0
        %944 = vmatprep.mubr.f32.mxu0 0.0
        %945 = vmatmul.mubr.f32.gmra.mrb[0].mxu0 %v756
        %v946 = vpop.f32.mrb[0].mxu0
        %v947 = vadd.f32 %v650, %v946
        %v948 = vpop.f32.mrb[0].mxu0
        %949 = vmatprep.mubr.f32.mxu0 0.0
        %950 = vmatmul.mubr.f32.gmra.mrb[0].mxu0 %v759
        %v951 = vpop.f32.mrb[0].mxu0
        %v952 = vadd.f32 %v650, %v951
        %v953 = vpop.f32.mrb[0].mxu0
        %954 = vmatprep.mubr.f32.mxu0 0.0
        %955 = vmatmul.mubr.f32.gmra.mrb[0].mxu0 %v762
        %v956 = vpop.f32.mrb[0].mxu0
        %v957 = vadd.f32 %v650, %v956
        %v958 = vpop.f32.mrb[0].mxu0
        %959 = vmatprep.mubr.f32.mxu0 0.0
        %960 = vmatmul.mubr.f32.gmra.mrb[0].mxu0 %v765
        %v961 = vpop.f32.mrb[0].mxu0
        %v962 = vadd.f32 %v650, %v961
        %v963 = vpop.f32.mrb[0].mxu0
        %964 = vmatprep.mubr.f32.mxu0 0.0
        %965 = vmatmul.mubr.f32.gmra.mrb[0].mxu0 %v768
        %v966 = vpop.f32.mrb[0].mxu0
        %v967 = vadd.f32 %v650, %v966
        %v968 = vpop.f32.mrb[0].mxu0
        %969 = vmatprep.mubr.f32.mxu0 0.0
        %970 = vmatmul.mubr.f32.gmra.mrb[0].mxu0 %v771
        %v971 = vpop.f32.mrb[0].mxu0
        %v972 = vadd.f32 %v650, %v971
        %v973 = vpop.f32.mrb[0].mxu0
        %974 = vmatprep.mubr.f32.mxu0 0.0
        %975 = vmatmul.mubr.f32.gmra.mrb[0].mxu0 %v774
        %v976 = vpop.f32.mrb[0].mxu0
        %v977 = vadd.f32 %v650, %v976
        %v978 = vpop.f32.mrb[0].mxu0
        %979 = vmatprep.mubr.f32.mxu0 0.0
        %980 = vmatmul.mubr.f32.gmra.mrb[0].mxu0 %v777
        %v981 = vpop.f32.mrb[0].mxu0
        %v982 = vadd.f32 %v650, %v981
        %v983 = vpop.f32.mrb[0].mxu0
        %984 = vmatprep.mubr.f32.mxu0 0.0
        %985 = vmatmul.mubr.f32.gmra.mrb[0].mxu0 %v780
        %v986 = vpop.f32.mrb[0].mxu0
        %v987 = vadd.f32 %v650, %v986
        %v988 = vpop.f32.mrb[0].mxu0
        %989 = vmatprep.mubr.f32.mxu0 0.0
        %990 = vmatmul.mubr.f32.gmra.mrb[0].mxu0 %v783
        %v991 = vpop.f32.mrb[0].mxu0
        %v992 = vadd.f32 %v650, %v991
        %v993 = vpop.f32.mrb[0].mxu0
        %994 = vmatprep.mubr.f32.mxu0 0.0
        %995 = vmatmul.mubr.f32.gmra.mrb[0].mxu0 %v786
        %v996 = vpop.f32.mrb[0].mxu0
        %v997 = vadd.f32 %v650, %v996
        %v998 = vpop.f32.mrb[0].mxu0
        %999 = vmatprep.mubr.f32.mxu0 0.0
        %1000 = vmatmul.mubr.f32.gmra.mrb[0].mxu0 %v789
        %v1001 = vpop.f32.mrb[0].mxu0
        %v1002 = vadd.f32 %v650, %v1001
        %v1003 = vpop.f32.mrb[0].mxu0
        %1004 = vmatprep.mubr.f32.mxu0 0.0
        %1005 = vmatmul.mubr.f32.gmra.mrb[0].mxu0 %v792
        %v1006 = vpop.f32.mrb[0].mxu0
        %v1007 = vadd.f32 %v650, %v1006
        %v1008 = vpop.f32.mrb[0].mxu0
        %1009 = vmatprep.mubr.f32.mxu0 0.0
        %1010 = vmatmul.mubr.f32.gmra.mrb[0].mxu0 %v795
        %v1011 = vpop.f32.mrb[0].mxu0
        %v1012 = vadd.f32 %v650, %v1011
        %v1013 = vpop.f32.mrb[0].mxu0
        %1014 = vmatprep.mubr.f32.mxu0 0.0
        %1015 = vmatmul.mubr.f32.gmra.mrb[0].mxu0 %v798
        %v1016 = vpop.f32.mrb[0].mxu0
        %v1017 = vadd.f32 %v650, %v1016
        %v1018 = vpop.f32.mrb[0].mxu0
        %1019 = vmatprep.mubr.f32.mxu0 0.0
        %1020 = vmatmul.mubr.f32.gmra.mrb[0].mxu0 %v801
        %v1021 = vpop.f32.mrb[0].mxu0
        %v1022 = vadd.f32 %v650, %v1021
        %v1023 = vpop.f32.mrb[0].mxu0
        %1024 = vmatprep.mubr.f32.mxu0 0.0
        %1025 = vmatmul.mubr.f32.gmra.mrb[0].mxu0 %v804
        %v1026 = vpop.f32.mrb[0].mxu0
        %v1027 = vadd.f32 %v650, %v1026
        %v1028 = vpop.f32.mrb[0].mxu0
        %1029 = vmatprep.mubr.f32.mxu0 0.0
        %1030 = vmatmul.mubr.f32.gmra.mrb[0].mxu0 %v807
        %v1031 = vpop.f32.mrb[0].mxu0
        %v1032 = vadd.f32 %v650, %v1031
        %v1033 = vpop.f32.mrb[0].mxu0
        %1034 = vmatprep.mubr.f32.mxu0 0.0
        %1035 = vmatmul.mubr.f32.gmra.mrb[0].mxu0 %v810
        %v1036 = vpop.f32.mrb[0].mxu0
        %v1037 = vadd.f32 %v650, %v1036
        %v1038 = vpop.f32.mrb[0].mxu0
        %1039 = vdwg.mxu0
        %1040 = vst [vmem:[%s324] sm:$0xff] %v882
        %1041 = vst [vmem:[%s324 + $0x8] sm:$0xff] %v887
        %1042 = vst [vmem:[%s324 + $0x10] sm:$0xff] %v892
        %1043 = vst [vmem:[%s324 + $0x18] sm:$0xff] %v897
        %1044 = vst [vmem:[%s324 + $0x20] sm:$0xff] %v902
        %1045 = vst [vmem:[%s324 + $0x28] sm:$0xff] %v907
        %1046 = vst [vmem:[%s324 + $0x30] sm:$0xff] %v912
        %1047 = vst [vmem:[%s324 + $0x38] sm:$0xff] %v917
        %1048 = vst [vmem:[%s324 + $0x40] sm:$0xff] %v922
        %1049 = vst [vmem:[%s324 + $0x48] sm:$0xff] %v927
        %1050 = vst [vmem:[%s324 + $0x50] sm:$0xff] %v932
        %1051 = vst [vmem:[%s324 + $0x58] sm:$0xff] %v937
        %1052 = vst [vmem:[%s324 + $0x60] sm:$0xff] %v942
        %1053 = vst [vmem:[%s324 + $0x68] sm:$0xff] %v947
        %1054 = vst [vmem:[%s324 + $0x70] sm:$0xff] %v952
        %1055 = vst [vmem:[%s324 + $0x78] sm:$0xff] %v957
        %1056 = vst [vmem:[%s324 + $0x80] sm:$0xff] %v962
        %1057 = vst [vmem:[%s324 + $0x88] sm:$0xff] %v967
        %1058 = vst [vmem:[%s324 + $0x90] sm:$0xff] %v972
        %1059 = vst [vmem:[%s324 + $0x98] sm:$0xff] %v977
        %1060 = vst [vmem:[%s324 + $0xa0] sm:$0xff] %v982
        %1061 = vst [vmem:[%s324 + $0xa8] sm:$0xff] %v987
        %1062 = vst [vmem:[%s324 + $0xb0] sm:$0xff] %v992
        %1063 = vst [vmem:[%s324 + $0xb8] sm:$0xff] %v997
        %1064 = vst [vmem:[%s324 + $0xc0] sm:$0xff] %v1002
        %1065 = vst [vmem:[%s324 + $0xc8] sm:$0xff] %v1007
        %1066 = vst [vmem:[%s324 + $0xd0] sm:$0xff] %v1012
        %1067 = vst [vmem:[%s324 + $0xd8] sm:$0xff] %v1017
        %1068 = vst [vmem:[%s324 + $0xe0] sm:$0xff] %v1022
        %1069 = vst [vmem:[%s324 + $0xe8] sm:$0xff] %v1027
        %1070 = vst [vmem:[%s324 + $0xf0] sm:$0xff] %v1032
        %1071 = vst [vmem:[%s324 + $0xf8] sm:$0xff] %v1037
        %s1072 = sand.u32 %s225, 1
        %s1073 = scalar_lea.sflag [#allocation3], %s1072
        %s1074 = sand.u32 %s225, 1
        %s1075 = smul.addr %s1074, 256
        %s1076 = scalar_lea.vmem [#allocation2], %s1075
        // Predicated region
        $region57: #{tpu_custom_call.1} parent=55 // pred_check
          %p1077 = pneg %p235
        $region58: #{tpu_custom_call.1} parent=55 // pred_check_branch
          %1079 = sbr.rel (%p1077) target = $region60
        $region59: #{tpu_custom_call.1} parent=55 // pred_region
          %s1080 = smul.u32 32, %s23
          %s1082 = ssub.s32 4096, 4096
          %1083 = vsyncadd %s1073, %s1082
          %s1084 = smul.addr %s1080, 128
          %s1085 = scalar_lea.hbm %s9, %s1084
          %s1086 = sshll.u32 %s1076, 4
          %s1087 = int_to_ptr.vmem [resolvable:$true] %s1086
          %1092 = dma.vmem_to_hbm [thread:$0]  %s1087, 4096, %s1085, %s1073, 128, 128, 8
        $region60: #{tpu_custom_call.1} parent=55 // pred_fallthru
          _
      $region56: #{tpu_custom_call.1} parent=5 // pred_fallthru
        _
      %p1093 = scmp.le.s32.totalorder 2, %s18
      // Predicated region
      $region61: #{tpu_custom_call.1} parent=5 // pred_check
        %p1094 = pneg %p1093
      $region62: #{tpu_custom_call.1} parent=5 // pred_check_branch
        %1096 = sbr.rel (%p1094) target = $region64
      $region63: #{tpu_custom_call.1} parent=5 // pred_region
        %s1097 = ssub.s32 %s18, 2
        // Predicated region
        $region65: #{tpu_custom_call.1} parent=63 // pred_check
          %p1098 = pneg %p241
        $region66: #{tpu_custom_call.1} parent=63 // pred_check_branch
          %1100 = sbr.rel (%p1098) target = $region68
        $region67: #{tpu_custom_call.1} parent=63 // pred_region
          %s1101 = sand.u32 %s226, 1
          %s1102 = scalar_lea.sflag [#allocation3], %s1101
          %s1103 = sand.u32 %s226, 1
          %s1104 = smul.addr %s1103, 256
          %s1105 = scalar_lea.vmem [#allocation2], %s1104
          %1106 = dma.done %s1102, 4096
        $region68: #{tpu_custom_call.1} parent=63 // pred_fallthru
          _
      $region64: #{tpu_custom_call.1} parent=5 // pred_fallthru
        _
    $region6: #{tpu_custom_call.1} parent=1 // loop_footer
      %s22 = sadd.s32 1, %s18
    $region7: #{tpu_custom_call.1} parent=1 // loop_footer_branch
      %17 = sbr.rel target = $region3
    $region8: #{tpu_custom_call.1} parent=1 // loop_exit
      _
    %1107 = vsyncpa [#allocation3], 1
    %s1108 = scalar_lea.sflag [#allocation3], 1
    %1109 = vsyncpa %s1108, 1

</llo_original>
